<compile_context>
chip_gen: v7x
topology: tpu7x:2x2x1
jax: 0.10.0
libtpu: 0.0.40
codegen_flags: <defaults>
</compile_context>

<pallas_src>
import functools

import jax
import jax.numpy as jnp
from jax.experimental import pallas as pl
from jax.experimental.pallas import tpu as pltpu

_LOG_PI = 1.1447298858494002  # log(pi)


# ----------------------------------------------------------------------------
# lgamma(a) - lgamma(a + 0.5) for a > 0
# TODO(synk): torch.lgamma / jax.lax.lgamma have no guaranteed Mosaic lowering,
#             so the lgamma difference is expanded manually with VPU/EUP ops.
# ----------------------------------------------------------------------------
def _fast_recip(x):
    """1/x: EUP approx reciprocal + one Newton-Raphson refinement (VPU mul/sub)."""
    r = pl.reciprocal(x, approx=True)
    return r * (2.0 - x * r)


def _lgamma_diff_half(a):
    """lgamma(a) - lgamma(a + 0.5), valid for a > 0.

    Uses the recurrence Gamma(x) = Gamma(x+8) / prod_{k=0..7}(x+k) on both arguments,
    then the Wallis-ratio asymptotic series (accurate to < 1e-7 rel. for z >= 8):
        Gamma(z+1/2)/Gamma(z) = sqrt(z) (1 - 1/(8z) + 1/(128 z^2) + 5/(1024 z^3)
                                           - 21/(32768 z^4) + O(z^-5)),  z = a + 8.
    lgamma(a) - lgamma(a+0.5) = -log( W(z) * P1 / P2 ).
    EUP cost for the pair: 1 sqrt + 1 log + 2 approx reciprocals.
    """
    p1 = a
    p2 = a + 0.5
    for k in range(1, 8):
        p1 = p1 * (a + float(k))
        p2 = p2 * (a + (float(k) + 0.5))
    z = a + 8.0
    inv_z = _fast_recip(z)
    w = jnp.sqrt(z) * (
        1.0
        + inv_z
        * (
            -0.125
            + inv_z
            * (0.0078125 + inv_z * (0.0048828125 + inv_z * (-0.000640869140625)))
        )
    )
    return -jnp.log(w * p1 * _fast_recip(p2))


# ----------------------------------------------------------------------------
# Per-block loss (transposed layout: blocks are (D, TILE), batch on lanes)
# ----------------------------------------------------------------------------
def _nig_loss_block(gamma, v, alpha, beta, targets, reg_weight):
    diff = targets - gamma
    gam = 2.0 * beta * (1.0 + v)
    u = gam + v * diff * diff
    nll = (
        0.5 * (_LOG_PI - jnp.log(v))
        - alpha * jnp.log(gam)
        + (alpha + 0.5) * jnp.log(u)
        + _lgamma_diff_half(alpha)
    )
    # ||targets - gamma||_1 over the regression dim D (sublane axis), keepdims -> (1, T)
    # broadcast against (D, T) -- matches torch.norm(..., 1, dim=1, keepdim=True).
    reg = jnp.sum(jnp.abs(diff), axis=0, keepdims=True) * (2.0 * v + alpha)
    return nll + reg_weight * reg


# ----------------------------------------------------------------------------
# Kernels
# ----------------------------------------------------------------------------
def _nig_partial_kernel(g_ref, v_ref, a_ref, b_ref, t_ref, o_ref, *, reg_weight):
    loss = _nig_loss_block(
        g_ref[...].astype(jnp.float32),
        v_ref[...].astype(jnp.float32),
        a_ref[...].astype(jnp.float32),
        b_ref[...].astype(jnp.float32),
        t_ref[...].astype(jnp.float32),
        reg_weight,
    )
    # Per-column (= per original batch row) partial sums; lane-dense (1, TILE) store.
    o_ref[...] = jnp.sum(loss, axis=0, keepdims=True)


def _nig_elemwise_kernel(g_ref, v_ref, a_ref, b_ref, t_ref, o_ref, *, reg_weight):
    loss = _nig_loss_block(
        g_ref[...].astype(jnp.float32),
        v_ref[...].astype(jnp.float32),
        a_ref[...].astype(jnp.float32),
        b_ref[...].astype(jnp.float32),
        t_ref[...].astype(jnp.float32),
        reg_weight,
    )
    o_ref[...] = loss.astype(o_ref.dtype)


# ----------------------------------------------------------------------------
# Wrapper (mirrors NIGLoss.forward)
# ----------------------------------------------------------------------------
def _pick_tile_cols(n, d, itemsize, vmem_budget_bytes=12 * 1024 * 1024, max_tile=32768):
    """Largest 128-multiple tile such that 6 double-buffered (D, TILE) blocks fit."""
    per_col_bytes = (5 + 1) * 2 * d * itemsize  # 5 inputs + 1 output, 2 buffers each
    tile = (vmem_budget_bytes // per_col_bytes) // 128 * 128
    tile = max(128, min(int(tile), max_tile))
    # Never wider than the (lane-rounded) batch itself -> avoids huge padding.
    n_rounded = ((n + 127) // 128) * 128
    return min(tile, n_rounded)


def nig_loss(gamma, v, alpha, beta, targets, *, reg_weight, reduction="mean",
             tile_cols=None):
    if reg_weight < 0:
        raise ValueError(
            f"The regularization weight should be non-negative, but got {reg_weight}."
        )
    if reduction not in ("none", "mean", "sum"):
        raise ValueError(f"{reduction} is not a valid value for reduction.")

    n, d = gamma.shape
    itemsize = jnp.dtype(gamma.dtype).itemsize
    if tile_cols is None:
        tile_cols = _pick_tile_cols(n, d, itemsize)
    assert tile_cols % 128 == 0, "tile_cols must be a multiple of 128 (lane width)"

    num_tiles = (n + tile_cols - 1) // tile_cols
    n_pad = num_tiles * tile_cols

    # Lane-dense layout: batch -> lanes (last axis), regression dim -> sublanes.
    # Padded columns get "safe" NIG parameters (finite loss) and are sliced off after
    # the kernel, so they never contribute to sums / means / 'none' outputs.
    def prep(x, pad_value):
        x_t = x.T  # (d, n)
        if n_pad != n:
            x_t = jnp.pad(x_t, ((0, 0), (0, n_pad - n)), constant_values=pad_value)
        return x_t

    gamma_t = prep(gamma, 0.0)
    v_t = prep(v, 1.0)
    alpha_t = prep(alpha, 1.5)
    beta_t = prep(beta, 1.0)
    targets_t = prep(targets, 0.0)

    in_specs = [pl.BlockSpec((d, tile_cols), lambda i: (0, i)) for _ in range(5)]
    grid = (num_tiles,)
    cparams = pltpu.CompilerParams(
        dimension_semantics=("parallel",),  # independent tiles -> megacore OK
        vmem_limit_bytes=32 * 1024 * 1024,  # raise v5e's 16 MiB default cap
    )

    if reduction in ("mean", "sum"):
        partials = pl.pallas_call(
            functools.partial(_nig_partial_kernel, reg_weight=float(reg_weight)),
            grid=grid,
            in_specs=in_specs,
            out_specs=pl.BlockSpec((None, 1, tile_cols), lambda i: (i, 0, 0)),
            out_shape=jax.ShapeDtypeStruct((num_tiles, 1, tile_cols), jnp.float32),
            compiler_params=cparams,
        )(gamma_t, v_t, alpha_t, beta_t, targets_t)
        # Flattened partials are per-(original)-row loss sums; drop padded rows.
        total = jnp.sum(partials.reshape(-1)[:n])
        if reduction == "mean":
            return total / jnp.float32(n * d)
        return total

    # reduction == "none"
    loss_t = pl.pallas_call(
        functools.partial(_nig_elemwise_kernel, reg_weight=float(reg_weight)),
        grid=grid,
        in_specs=in_specs,
        out_specs=pl.BlockSpec((d, tile_cols), lambda i: (0, i)),
        out_shape=jax.ShapeDtypeStruct((d, n_pad), jnp.float32),
        compiler_params=cparams,
    )(gamma_t, v_t, alpha_t, beta_t, targets_t)
    # Transpose back + drop padded rows (cheap XLA ops outside the kernel).
    return loss_t.T[:n]


# ----------------------------------------------------------------------------
# Pure-JAX reference (for sanity check)
# ----------------------------------------------------------------------------
def nig_loss_ref(gamma, v, alpha, beta, targets, *, reg_weight, reduction="mean"):
    gam = 2.0 * beta * (1.0 + v)
    nll = (
        0.5 * jnp.log(jnp.pi / v)
        - alpha * jnp.log(gam)
        + (alpha + 0.5) * jnp.log(gam + v * (targets - gamma) ** 2)
        + jax.scipy.special.gammaln(alpha)
        - jax.scipy.special.gammaln(alpha + 0.5)
    )
    reg = jnp.sum(jnp.abs(targets - gamma), axis=1, keepdims=True) * (2.0 * v + alpha)
    loss = nll + reg_weight * reg
    if reduction == "mean":
        return loss.mean()
    if reduction == "sum":
        return loss.sum()
    return loss


if __name__ == "__main__":
    key = jax.random.PRNGKey(0)
    k1, k2, k3, k4, k5 = jax.random.split(key, 5)

    N, D = 16, 4  # small synthetic regression batch (exercises the ragged-N padding)
    gamma = jax.random.normal(k1, (N, D), jnp.float32)
    v = jax.nn.softplus(jax.random.normal(k2, (N, D), jnp.float32)) + 0.1       # > 0
    alpha = jax.nn.softplus(jax.random.normal(k3, (N, D), jnp.float32)) + 1.0   # > 1
    beta = jax.nn.softplus(jax.random.normal(k4, (N, D), jnp.float32)) + 0.1    # > 0
    targets = jax.random.normal(k5, (N, D), jnp.float32)

    reg_weight = 0.01

    # mean reduction (module default)
    out = nig_loss(gamma, v, alpha, beta, targets, reg_weight=reg_weight, reduction="mean")
    out = jax.block_until_ready(out)
    ref = nig_loss_ref(gamma, v, alpha, beta, targets, reg_weight=reg_weight, reduction="mean")
    assert jnp.allclose(out, ref, rtol=1e-4, atol=1e-4), (out, ref)

    # sum reduction
    out_sum = nig_loss(gamma, v, alpha, beta, targets, reg_weight=reg_weight, reduction="sum")
    out_sum = jax.block_until_ready(out_sum)
    ref_sum = nig_loss_ref(gamma, v, alpha, beta, targets, reg_weight=reg_weight, reduction="sum")
    assert jnp.allclose(out_sum, ref_sum, rtol=1e-4, atol=1e-4), (out_sum, ref_sum)

    # elementwise ('none') reduction
    out_none = nig_loss(gamma, v, alpha, beta, targets, reg_weight=reg_weight, reduction="none")
    out_none = jax.block_until_ready(out_none)
    ref_none = nig_loss_ref(gamma, v, alpha, beta, targets, reg_weight=reg_weight, reduction="none")
    assert out_none.shape == (N, D)
    assert jnp.allclose(out_none, ref_none, rtol=1e-4, atol=1e-4)

    print("KERNEL_OK")
</pallas_src>

<mosaic_0001>
module attributes {stable_mosaic.version = 11 : i64} {
  func.func @_nig_partial_kernel(%arg0: i32, %arg1: memref<4x128xf32, #tpu.memory_space<vmem>>, %arg2: memref<4x128xf32, #tpu.memory_space<vmem>>, %arg3: memref<4x128xf32, #tpu.memory_space<vmem>>, %arg4: memref<4x128xf32, #tpu.memory_space<vmem>>, %arg5: memref<4x128xf32, #tpu.memory_space<vmem>>, %arg6: memref<1x1x128xf32, #tpu.memory_space<vmem>>) attributes {dimension_semantics = [#tpu.dimension_semantics<parallel>], iteration_bounds = array<i64: 1>, scalar_prefetch = 0 : i64, scratch_operands = 0 : i64, tpu.core_type = #tpu.core_type<tc>, window_params = [{transform_indices = @transform_0, window_bounds = array<i64: 4, 128>}, {transform_indices = @transform_1, window_bounds = array<i64: 4, 128>}, {transform_indices = @transform_2, window_bounds = array<i64: 4, 128>}, {transform_indices = @transform_3, window_bounds = array<i64: 4, 128>}, {transform_indices = @transform_4, window_bounds = array<i64: 4, 128>}, {transform_indices = @transform_5, window_bounds = array<i64: 1, 1, 128>}]} {
    %c0 = arith.constant 0 : index
    %c0_0 = arith.constant 0 : index
    %0 = vector.load %arg1[%c0, %c0_0] : memref<4x128xf32, #tpu.memory_space<vmem>>, vector<4x128xf32>
    %c0_1 = arith.constant 0 : index
    %c0_2 = arith.constant 0 : index
    %1 = vector.load %arg2[%c0_1, %c0_2] : memref<4x128xf32, #tpu.memory_space<vmem>>, vector<4x128xf32>
    %c0_3 = arith.constant 0 : index
    %c0_4 = arith.constant 0 : index
    %2 = vector.load %arg3[%c0_3, %c0_4] : memref<4x128xf32, #tpu.memory_space<vmem>>, vector<4x128xf32>
    %c0_5 = arith.constant 0 : index
    %c0_6 = arith.constant 0 : index
    %3 = vector.load %arg4[%c0_5, %c0_6] : memref<4x128xf32, #tpu.memory_space<vmem>>, vector<4x128xf32>
    %c0_7 = arith.constant 0 : index
    %c0_8 = arith.constant 0 : index
    %4 = vector.load %arg5[%c0_7, %c0_8] : memref<4x128xf32, #tpu.memory_space<vmem>>, vector<4x128xf32>
    %5 = arith.subf %4, %0 : vector<4x128xf32>
    %cst = arith.constant 2.000000e+00 : f32
    %6 = vector.broadcast %cst : f32 to vector<4x128xf32>
    %7 = arith.mulf %6, %3 : vector<4x128xf32>
    %cst_9 = arith.constant 1.000000e+00 : f32
    %8 = vector.broadcast %cst_9 : f32 to vector<4x128xf32>
    %9 = arith.addf %8, %1 : vector<4x128xf32>
    %10 = arith.mulf %7, %9 : vector<4x128xf32>
    %11 = arith.mulf %1, %5 : vector<4x128xf32>
    %12 = arith.mulf %11, %5 : vector<4x128xf32>
    %13 = arith.addf %10, %12 : vector<4x128xf32>
    %14 = math.log %1 : vector<4x128xf32>
    %cst_10 = arith.constant 1.14472985 : f32
    %15 = vector.broadcast %cst_10 : f32 to vector<4x128xf32>
    %16 = arith.subf %15, %14 : vector<4x128xf32>
    %cst_11 = arith.constant 5.000000e-01 : f32
    %17 = vector.broadcast %cst_11 : f32 to vector<4x128xf32>
    %18 = arith.mulf %17, %16 : vector<4x128xf32>
    %19 = math.log %10 : vector<4x128xf32>
    %20 = arith.mulf %2, %19 : vector<4x128xf32>
    %21 = arith.subf %18, %20 : vector<4x128xf32>
    %cst_12 = arith.constant 5.000000e-01 : f32
    %22 = vector.broadcast %cst_12 : f32 to vector<4x128xf32>
    %23 = arith.addf %2, %22 : vector<4x128xf32>
    %24 = math.log %13 : vector<4x128xf32>
    %25 = arith.mulf %23, %24 : vector<4x128xf32>
    %26 = arith.addf %21, %25 : vector<4x128xf32>
    %cst_13 = arith.constant 5.000000e-01 : f32
    %27 = vector.broadcast %cst_13 : f32 to vector<4x128xf32>
    %28 = arith.addf %2, %27 : vector<4x128xf32>
    %cst_14 = arith.constant 1.000000e+00 : f32
    %29 = vector.broadcast %cst_14 : f32 to vector<4x128xf32>
    %30 = arith.addf %2, %29 : vector<4x128xf32>
    %31 = arith.mulf %2, %30 : vector<4x128xf32>
    %cst_15 = arith.constant 1.500000e+00 : f32
    %32 = vector.broadcast %cst_15 : f32 to vector<4x128xf32>
    %33 = arith.addf %2, %32 : vector<4x128xf32>
    %34 = arith.mulf %28, %33 : vector<4x128xf32>
    %cst_16 = arith.constant 2.000000e+00 : f32
    %35 = vector.broadcast %cst_16 : f32 to vector<4x128xf32>
    %36 = arith.addf %2, %35 : vector<4x128xf32>
    %37 = arith.mulf %31, %36 : vector<4x128xf32>
    %cst_17 = arith.constant 2.500000e+00 : f32
    %38 = vector.broadcast %cst_17 : f32 to vector<4x128xf32>
    %39 = arith.addf %2, %38 : vector<4x128xf32>
    %40 = arith.mulf %34, %39 : vector<4x128xf32>
    %cst_18 = arith.constant 3.000000e+00 : f32
    %41 = vector.broadcast %cst_18 : f32 to vector<4x128xf32>
    %42 = arith.addf %2, %41 : vector<4x128xf32>
    %43 = arith.mulf %37, %42 : vector<4x128xf32>
    %cst_19 = arith.constant 3.500000e+00 : f32
    %44 = vector.broadcast %cst_19 : f32 to vector<4x128xf32>
    %45 = arith.addf %2, %44 : vector<4x128xf32>
    %46 = arith.mulf %40, %45 : vector<4x128xf32>
    %cst_20 = arith.constant 4.000000e+00 : f32
    %47 = vector.broadcast %cst_20 : f32 to vector<4x128xf32>
    %48 = arith.addf %2, %47 : vector<4x128xf32>
    %49 = arith.mulf %43, %48 : vector<4x128xf32>
    %cst_21 = arith.constant 4.500000e+00 : f32
    %50 = vector.broadcast %cst_21 : f32 to vector<4x128xf32>
    %51 = arith.addf %2, %50 : vector<4x128xf32>
    %52 = arith.mulf %46, %51 : vector<4x128xf32>
    %cst_22 = arith.constant 5.000000e+00 : f32
    %53 = vector.broadcast %cst_22 : f32 to vector<4x128xf32>
    %54 = arith.addf %2, %53 : vector<4x128xf32>
    %55 = arith.mulf %49, %54 : vector<4x128xf32>
    %cst_23 = arith.constant 5.500000e+00 : f32
    %56 = vector.broadcast %cst_23 : f32 to vector<4x128xf32>
    %57 = arith.addf %2, %56 : vector<4x128xf32>
    %58 = arith.mulf %52, %57 : vector<4x128xf32>
    %cst_24 = arith.constant 6.000000e+00 : f32
    %59 = vector.broadcast %cst_24 : f32 to vector<4x128xf32>
    %60 = arith.addf %2, %59 : vector<4x128xf32>
    %61 = arith.mulf %55, %60 : vector<4x128xf32>
    %cst_25 = arith.constant 6.500000e+00 : f32
    %62 = vector.broadcast %cst_25 : f32 to vector<4x128xf32>
    %63 = arith.addf %2, %62 : vector<4x128xf32>
    %64 = arith.mulf %58, %63 : vector<4x128xf32>
    %cst_26 = arith.constant 7.000000e+00 : f32
    %65 = vector.broadcast %cst_26 : f32 to vector<4x128xf32>
    %66 = arith.addf %2, %65 : vector<4x128xf32>
    %67 = arith.mulf %61, %66 : vector<4x128xf32>
    %cst_27 = arith.constant 7.500000e+00 : f32
    %68 = vector.broadcast %cst_27 : f32 to vector<4x128xf32>
    %69 = arith.addf %2, %68 : vector<4x128xf32>
    %70 = arith.mulf %64, %69 : vector<4x128xf32>
    %cst_28 = arith.constant 8.000000e+00 : f32
    %71 = vector.broadcast %cst_28 : f32 to vector<4x128xf32>
    %72 = arith.addf %2, %71 : vector<4x128xf32>
    %73 = tpu.reciprocal %72 {approx = true} : vector<4x128xf32> -> vector<4x128xf32>
    %74 = arith.mulf %72, %73 : vector<4x128xf32>
    %cst_29 = arith.constant 2.000000e+00 : f32
    %75 = vector.broadcast %cst_29 : f32 to vector<4x128xf32>
    %76 = arith.subf %75, %74 : vector<4x128xf32>
    %77 = arith.mulf %73, %76 : vector<4x128xf32>
    %78 = math.sqrt %72 : vector<4x128xf32>
    %cst_30 = arith.constant -6.4086914E-4 : f32
    %79 = vector.broadcast %cst_30 : f32 to vector<4x128xf32>
    %80 = arith.mulf %77, %79 : vector<4x128xf32>
    %cst_31 = arith.constant 0.0048828125 : f32
    %81 = vector.broadcast %cst_31 : f32 to vector<4x128xf32>
    %82 = arith.addf %81, %80 : vector<4x128xf32>
    %83 = arith.mulf %77, %82 : vector<4x128xf32>
    %cst_32 = arith.constant 7.812500e-03 : f32
    %84 = vector.broadcast %cst_32 : f32 to vector<4x128xf32>
    %85 = arith.addf %84, %83 : vector<4x128xf32>
    %86 = arith.mulf %77, %85 : vector<4x128xf32>
    %cst_33 = arith.constant -1.250000e-01 : f32
    %87 = vector.broadcast %cst_33 : f32 to vector<4x128xf32>
    %88 = arith.addf %87, %86 : vector<4x128xf32>
    %89 = arith.mulf %77, %88 : vector<4x128xf32>
    %cst_34 = arith.constant 1.000000e+00 : f32
    %90 = vector.broadcast %cst_34 : f32 to vector<4x128xf32>
    %91 = arith.addf %90, %89 : vector<4x128xf32>
    %92 = arith.mulf %78, %91 : vector<4x128xf32>
    %93 = arith.mulf %92, %67 : vector<4x128xf32>
    %94 = tpu.reciprocal %70 {approx = true} : vector<4x128xf32> -> vector<4x128xf32>
    %95 = arith.mulf %70, %94 : vector<4x128xf32>
    %cst_35 = arith.constant 2.000000e+00 : f32
    %96 = vector.broadcast %cst_35 : f32 to vector<4x128xf32>
    %97 = arith.subf %96, %95 : vector<4x128xf32>
    %98 = arith.mulf %94, %97 : vector<4x128xf32>
    %99 = arith.mulf %93, %98 : vector<4x128xf32>
    %100 = math.log %99 : vector<4x128xf32>
    %cst_36 = arith.constant 0.000000e+00 : f32
    %101 = vector.broadcast %cst_36 : f32 to vector<4x128xf32>
    %102 = arith.subf %101, %100 : vector<4x128xf32>
    %103 = arith.addf %26, %102 : vector<4x128xf32>
    %104 = math.absf %5 : vector<4x128xf32>
    %cst_37 = arith.constant dense<0.000000e+00> : vector<128xf32>
    %105 = vector.multi_reduction <add>, %104, %cst_37 [0] : vector<4x128xf32> to vector<128xf32>
    %106 = vector.shape_cast %105 : vector<128xf32> to vector<1x128xf32>
    %cst_38 = arith.constant 2.000000e+00 : f32
    %107 = vector.broadcast %cst_38 : f32 to vector<4x128xf32>
    %108 = arith.mulf %107, %1 : vector<4x128xf32>
    %109 = arith.addf %108, %2 : vector<4x128xf32>
    %110 = vector.broadcast %106 : vector<1x128xf32> to vector<4x128xf32>
    %111 = arith.mulf %110, %109 : vector<4x128xf32>
    %cst_39 = arith.constant 0.00999999977 : f32
    %112 = vector.broadcast %cst_39 : f32 to vector<4x128xf32>
    %113 = arith.mulf %112, %111 : vector<4x128xf32>
    %114 = arith.addf %103, %113 : vector<4x128xf32>
    %cst_40 = arith.constant dense<0.000000e+00> : vector<128xf32>
    %115 = vector.multi_reduction <add>, %114, %cst_40 [0] : vector<4x128xf32> to vector<128xf32>
    %116 = vector.shape_cast %115 : vector<128xf32> to vector<1x128xf32>
    %c0_41 = arith.constant 0 : index
    %c0_42 = arith.constant 0 : index
    %c0_43 = arith.constant 0 : index
    %117 = vector.load %arg6[%c0_41, %c0_42, %c0_43] : memref<1x1x128xf32, #tpu.memory_space<vmem>>, vector<1x1x128xf32>
    %118 = vector.shape_cast %117 : vector<1x1x128xf32> to vector<1x128xf32>
    %119 = vector.shape_cast %116 : vector<1x128xf32> to vector<1x1x128xf32>
    tpu.vector_store %arg6[%c0_41, %c0_42, %c0_43], %119 {strides = array<i32>} : memref<1x1x128xf32, #tpu.memory_space<vmem>>, vector<1x1x128xf32>,
    return
  }
  func.func @transform_0(%arg0: i32) -> (i32, i32) {
    %c0_i32 = arith.constant 0 : i32
    %c0_i32_0 = arith.constant 0 : i32
    return %c0_i32, %arg0 : i32, i32
  }
  func.func @transform_1(%arg0: i32) -> (i32, i32) {
    %c0_i32 = arith.constant 0 : i32
    %c0_i32_0 = arith.constant 0 : i32
    return %c0_i32, %arg0 : i32, i32
  }
  func.func @transform_2(%arg0: i32) -> (i32, i32) {
    %c0_i32 = arith.constant 0 : i32
    %c0_i32_0 = arith.constant 0 : i32
    return %c0_i32, %arg0 : i32, i32
  }
  func.func @transform_3(%arg0: i32) -> (i32, i32) {
    %c0_i32 = arith.constant 0 : i32
    %c0_i32_0 = arith.constant 0 : i32
    return %c0_i32, %arg0 : i32, i32
  }
  func.func @transform_4(%arg0: i32) -> (i32, i32) {
    %c0_i32 = arith.constant 0 : i32
    %c0_i32_0 = arith.constant 0 : i32
    return %c0_i32, %arg0 : i32, i32
  }
  func.func @transform_5(%arg0: i32) -> (i32, i32, i32) {
    %c0_i32 = arith.constant 0 : i32
    %c0_i32_0 = arith.constant 0 : i32
    %c0_i32_1 = arith.constant 0 : i32
    return %arg0, %c0_i32, %c0_i32_0 : i32, i32, i32
  }
}

</mosaic_0001>

<llo_original>
// kernel: tpu_custom_call.1
$region0: #{tpu_custom_call.1}
  #allocation0 [shape = 'u32[]', space=smem, size = 0x4, offset = 0x4, fixed_abs, tag = 'smem constant byte address 0x4 - core index']
  #allocation1 [shape = 'u32[144,128]{1,0:T(1,128)}', space=vmem, size = 0x12000, scoped, tag = 'internal scratch']
  %s0 = inlined_call_operand.hbm [shape: f32[4,128], index: 0, kind: input, shape index: {}]
  %s1 = inlined_call_operand.hbm [shape: f32[4,128], index: 1, kind: input, shape index: {}]
  %s2 = inlined_call_operand.vmem [shape: f32[4,128], index: 2, kind: input, shape index: {}]
  %s3 = inlined_call_operand.vmem [shape: f32[4,128], index: 3, kind: input, shape index: {}]
  %s4 = inlined_call_operand.vmem [shape: f32[4,128], index: 4, kind: input, shape index: {}]
  %s5 = inlined_call_operand.hbm [shape: f32[1,1,128], index: 5, kind: output, shape index: {}]
  %s6 = sld [smem:[#allocation0]]
  $region38: #{tpu_custom_call.1} parent=0
    _
  %s8 = ssub.s32 1, %s6
  %s9 = scalar_select 0, %s8, %s6
  $region1: #{tpu_custom_call.1} parent=0
    #allocation2 [shape = 'u8[2048]{0}', space=vmem, size = 0x800, scoped, tag = 'input window, operand 0, single buffered']
    #allocation3 [shape = 's32[1]{0}', space=sflag, size = 0x4, scoped, tag = 'scoped memory for tpu_custom_call.1']
    #allocation4 [shape = 's32[1]{0}', space=sflag, size = 0x4, scoped, tag = 'scoped memory for tpu_custom_call.1']
    #allocation5 [shape = 'u8[2048]{0}', space=vmem, size = 0x800, scoped, tag = 'input window, operand 1, single buffered']
    #allocation6 [shape = 's32[1]{0}', space=sflag, size = 0x4, scoped, tag = 'scoped memory for tpu_custom_call.1']
    #allocation7 [shape = 'u8[512]{0}', space=vmem, size = 0x400, scoped, tag = 'output window, operand 0, single buffered']
    %10 = vsyncpa [#allocation3], 0
    %11 = vsyncpa [#allocation6], 0
    %12 = vsyncpa [#allocation4], 0
    // Predicated region
    $region2: #{tpu_custom_call.1} parent=1 // pred_check
      _
    $region3: #{tpu_custom_call.1} parent=1 // pred_check_branch
      %14 = sbr.rel (0) target = $region5
    $region4: #{tpu_custom_call.1} parent=1 // pred_region
      %s16 = ssub.s32 64, 64
      %17 = vsyncadd [#allocation3], %s16
      %s19 = sshll.u32 [#allocation2], 4
      %s20 = int_to_ptr.vmem [resolvable:$true] %s19
      %22 = dma.hbm_to_vmem [thread:$0]  %s0, 64, %s20, [#allocation3]
    $region5: #{tpu_custom_call.1} parent=1 // pred_fallthru
      _
    // Predicated region
    $region6: #{tpu_custom_call.1} parent=1 // pred_check
      _
    $region7: #{tpu_custom_call.1} parent=1 // pred_check_branch
      %24 = sbr.rel (0) target = $region9
    $region8: #{tpu_custom_call.1} parent=1 // pred_region
      %s26 = ssub.s32 64, 64
      %27 = vsyncadd [#allocation6], %s26
      %s29 = sshll.u32 [#allocation5], 4
      %s30 = int_to_ptr.vmem [resolvable:$true] %s29
      %32 = dma.hbm_to_vmem [thread:$0]  %s1, 64, %s30, [#allocation6]
    $region9: #{tpu_custom_call.1} parent=1 // pred_fallthru
      _
    // Predicated region
    $region10: #{tpu_custom_call.1} parent=1 // pred_check
      _
    $region11: #{tpu_custom_call.1} parent=1 // pred_check_branch
      %34 = sbr.rel (0) target = $region13
    $region12: #{tpu_custom_call.1} parent=1 // pred_region
      _
    $region13: #{tpu_custom_call.1} parent=1 // pred_fallthru
      _
    // Predicated region
    $region14: #{tpu_custom_call.1} parent=1 // pred_check
      _
    $region15: #{tpu_custom_call.1} parent=1 // pred_check_branch
      %36 = sbr.rel (0) target = $region17
    $region16: #{tpu_custom_call.1} parent=1 // pred_region
      _
    $region17: #{tpu_custom_call.1} parent=1 // pred_fallthru
      _
    // Predicated region
    $region18: #{tpu_custom_call.1} parent=1 // pred_check
      _
    $region19: #{tpu_custom_call.1} parent=1 // pred_check_branch
      %38 = sbr.rel (0) target = $region21
    $region20: #{tpu_custom_call.1} parent=1 // pred_region
      _
    $region21: #{tpu_custom_call.1} parent=1 // pred_fallthru
      _
    // Predicated region
    $region22: #{tpu_custom_call.1} parent=1 // pred_check
      _
    $region23: #{tpu_custom_call.1} parent=1 // pred_check_branch
      %40 = sbr.rel (0) target = $region25
    $region24: #{tpu_custom_call.1} parent=1 // pred_region
      %41 = dma.done [#allocation3], 64
    $region25: #{tpu_custom_call.1} parent=1 // pred_fallthru
      _
    // Predicated region
    $region26: #{tpu_custom_call.1} parent=1 // pred_check
      _
    $region27: #{tpu_custom_call.1} parent=1 // pred_check_branch
      %43 = sbr.rel (0) target = $region29
    $region28: #{tpu_custom_call.1} parent=1 // pred_region
      %44 = dma.done [#allocation6], 64
    $region29: #{tpu_custom_call.1} parent=1 // pred_fallthru
      _
    %v45 = vld [vmem:[#allocation2] sm:$0xf]
    %v46 = vld [vmem:[#allocation5] sm:$0xf]
    %v47 = vld [vmem:[%s2] sm:$0xf]
    %v48 = vld [vmem:[%s3] sm:$0xf]
    %v49 = vld [vmem:[%s4] sm:$0xf]
    %v50 = vsub.f32 %v49, %v45
    %v51 = vmul.f32 %v48, 2.0
    %v52 = vadd.f32 %v46, 1.0
    %v53 = vmul.f32 %v51, %v52
    %v54 = vmul.f32 %v46, %v50
    %v55 = vmul.f32 %v54, %v50
    %v56 = vadd.f32 %v53, %v55
    %v57 = vlog2.pop %v46
    %v58 = vmul.f32 %v57, 0.6931472
    %v59 = vsub.f32 1.1447299, %v58
    %v60 = vmul.f32 %v59, 0.5
    %v61 = vlog2.pop %v53
    %v62 = vmul.f32 %v61, 0.6931472
    %v63 = vmul.f32 %v47, %v62
    %v64 = vsub.f32 %v60, %v63
    %v65 = vadd.f32 %v47, 0.5
    %v66 = vlog2.pop %v56
    %v67 = vmul.f32 %v66, 0.6931472
    %v68 = vmul.f32 %v65, %v67
    %v69 = vadd.f32 %v64, %v68
    %v70 = vadd.f32 %v47, 1.0
    %v71 = vmul.f32 %v47, %v70
    %v72 = vadd.f32 %v47, 1.5
    %v73 = vmul.f32 %v65, %v72
    %v74 = vadd.f32 %v47, 2.0
    %v75 = vmul.f32 %v71, %v74
    %v76 = vadd.f32 %v47, 2.5
    %v77 = vmul.f32 %v73, %v76
    %v78 = vadd.f32 %v47, 3.0
    %v79 = vmul.f32 %v75, %v78
    %v80 = vadd.f32 %v47, 3.5
    %v81 = vmul.f32 %v77, %v80
    %v82 = vadd.f32 %v47, 4.0
    %v83 = vmul.f32 %v79, %v82
    %v84 = vadd.f32 %v47, 4.5
    %v85 = vmul.f32 %v81, %v84
    %v86 = vadd.f32 %v47, 5.0
    %v87 = vmul.f32 %v83, %v86
    %v88 = vadd.f32 %v47, 5.5
    %v89 = vmul.f32 %v85, %v88
    %v90 = vadd.f32 %v47, 6.0
    %v91 = vmul.f32 %v87, %v90
    %v92 = vadd.f32 %v47, 6.5
    %v93 = vmul.f32 %v89, %v92
    %v94 = vadd.f32 %v47, 7.0
    %v95 = vmul.f32 %v91, %v94
    %v96 = vadd.f32 %v47, 7.5
    %v97 = vmul.f32 %v93, %v96
    %v98 = vadd.f32 %v47, 8.0
    %v99 = vrcp.pop %v98
    %v100 = vmul.f32 %v98, %v99
    %v101 = vsub.f32 2.0, %v100
    %v102 = vmul.f32 %v99, %v101
    %v103 = vrsqrt.pop %v98
    %v104 = vmul.f32 %v98, %v103
    %vm105 = vcmp.eq.f32.partialorder %v98, inf
    %v106 = vsel %vm105, %v98, %v104
    %vm107 = vcmp.eq.f32.partialorder %v98, 0.0
    %v108 = vand.u32 %v98, 2147483648
    %v109 = vsel %vm107, %v108, %v106
    %v110 = vmul.f32 %v102, -0.00064086914
    %v111 = vadd.f32 %v110, 0.0048828125
    %v112 = vmul.f32 %v102, %v111
    %v113 = vadd.f32 %v112, 0.0078125
    %v114 = vmul.f32 %v102, %v113
    %v115 = vadd.f32 %v114, -0.125
    %v116 = vmul.f32 %v102, %v115
    %v117 = vadd.f32 %v116, 1.0
    %v118 = vmul.f32 %v109, %v117
    %v119 = vmul.f32 %v118, %v95
    %v120 = vrcp.pop %v97
    %v121 = vmul.f32 %v97, %v120
    %v122 = vsub.f32 2.0, %v121
    %v123 = vmul.f32 %v120, %v122
    %v124 = vmul.f32 %v119, %v123
    %v125 = vlog2.pop %v124
    %v126 = vmul.f32 %v125, 0.6931472
    %v127 = vsub.f32 0.0, %v126
    %v128 = vadd.f32 %v69, %v127
    %v129 = vand.u32 2147483647, %v50
    %vm130 = vcmask 1043456
    %v131 = vsel %vm130, %v129, 0.0
    %v132 = vrot.slane %v131, 4
    %v133 = vadd.f32 %v131, %v132
    %v134 = vrot.slane %v133, 2
    %v135 = vadd.f32 %v133, %v134
    %v136 = vrot.slane %v135, 1
    %v137 = vadd.f32 %v135, %v136
    %v138 = vmul.f32 %v46, 2.0
    %v139 = vadd.f32 %v138, %v47
    %v140 = vmul.f32 %v137, %v139
    %v141 = vmul.f32 %v140, 0.01
    %v142 = vadd.f32 %v128, %v141
    %v143 = vsel %vm130, %v142, 0.0
    %v144 = vrot.slane %v143, 4
    %v145 = vadd.f32 %v143, %v144
    %v146 = vrot.slane %v145, 2
    %v147 = vadd.f32 %v145, %v146
    %v148 = vrot.slane %v147, 1
    %v149 = vadd.f32 %v147, %v148
    %150 = vst [vmem:[#allocation7] sm:$0x1] %v149
    // Predicated region
    $region30: #{tpu_custom_call.1} parent=1 // pred_check
      _
    $region31: #{tpu_custom_call.1} parent=1 // pred_check_branch
      %152 = sbr.rel (0) target = $region33
    $region32: #{tpu_custom_call.1} parent=1 // pred_region
      %s154 = ssub.s32 16, 16
      %155 = vsyncadd [#allocation4], %s154
      %s157 = sshll.u32 [#allocation7], 4
      %s158 = int_to_ptr.vmem [resolvable:$true] %s157
      %160 = dma.vmem_to_hbm [thread:$0]  %s158, 16, %s5, [#allocation4]
    $region33: #{tpu_custom_call.1} parent=1 // pred_fallthru
      _
    // Predicated region
    $region34: #{tpu_custom_call.1} parent=1 // pred_check
      _
    $region35: #{tpu_custom_call.1} parent=1 // pred_check_branch
      %162 = sbr.rel (0) target = $region37
    $region36: #{tpu_custom_call.1} parent=1 // pred_region
      %163 = dma.done [#allocation4], 16
    $region37: #{tpu_custom_call.1} parent=1 // pred_fallthru
      _
    %164 = vsyncpa [#allocation3], 1
    %165 = vsyncpa [#allocation6], 1
    %166 = vsyncpa [#allocation4], 1

</llo_original>
